<compile_context>
chip_gen: v7x
topology: tpu7x:2x2x1
jax: 0.10.0
libtpu: 0.0.40
codegen_flags: <defaults>
</compile_context>

<pallas_src>
import jax
import jax.numpy as jnp
from jax.experimental import pallas as pl
from jax.experimental.pallas import tpu as pltpu

SUBLANE = 8                # f32 sublane granularity (second-to-last dim)
SMALL_BATCH_NO_GRID = 64   # below this, launch latency dominates -> single block


def _round_up(n: int, m: int) -> int:
    return ((n + m - 1) // m) * m


def _cdiv(a: int, b: int) -> int:
    return (a + b - 1) // b


def simplenet_kernel(x_ref, w1_ref, b1_ref, w2_ref, b2_ref, out_ref):
    # fc1: [TB, Din] @ [Din, H] (bf16 on the MXU, f32 accumulation) + bias, ReLU (f32 VPU)
    x = x_ref[...].astype(jnp.bfloat16)
    h = jnp.dot(x, w1_ref[...], preferred_element_type=jnp.float32)
    h = jnp.maximum(h + b1_ref[...], 0.0)
    # fc2: [TB, H] @ [H, Dout]
    logits = jnp.dot(h.astype(jnp.bfloat16), w2_ref[...],
                     preferred_element_type=jnp.float32)
    out_ref[...] = (logits + b2_ref[...]).astype(out_ref.dtype)


def prepare_params(w1, b1, w2, b2):
    """One-time parameter prep (call once at setup, NOT per forward).

    Weights are stored transposed vs. PyTorch (kernel computes x @ w1 + b1) and
    cast to bf16 (halves weight DMA, native MXU dtype). Biases stay f32, shaped
    [1, N] for a TPU-friendly 2-D layout.
    """
    return (w1.astype(jnp.bfloat16),
            b1.astype(jnp.float32).reshape(1, -1),
            w2.astype(jnp.bfloat16),
            b2.astype(jnp.float32).reshape(1, -1))


def simplenet_forward(x, params, *, block_batch=512):
    """x: [B, Din] (f32 or bf16), params from prepare_params -> [B, Dout] f32."""
    w1, b1, w2, b2 = params
    B, Din = x.shape
    H = w1.shape[1]
    Dout = w2.shape[1]

    # Validate/normalize the batch tile (must be a sublane multiple).
    block_batch = max(SUBLANE, _round_up(int(block_batch), SUBLANE))

    cost = pl.CostEstimate(
        flops=2 * B * (Din * H + H * Dout),
        transcendentals=0,
        bytes_accessed=(B * Din * x.dtype.itemsize          # x read
                        + Din * H * 2 + H * 4               # w1 (bf16), b1 (f32)
                        + H * Dout * 2 + Dout * 4           # w2 (bf16), b2 (f32)
                        + B * Dout * 4),                    # output write
    )
    out_shape = jax.ShapeDtypeStruct((B, Dout), jnp.float32)

    if B <= SMALL_BATCH_NO_GRID:
        # Launch-latency-bound size: no grid, whole arrays as single VMEM blocks,
        # no per-step pipeline overhead.
        return pl.pallas_call(
            simplenet_kernel,
            out_shape=out_shape,
            cost_estimate=cost,
        )(x, w1, b1, w2, b2)

    # Gridded path: stream only the batch axis; weights/biases stay VMEM-resident
    # via constant (0,0) index maps.  Guarantee >= 2 tiles so the "parallel"
    # batch axis can be split across both TensorCores on v7x.
    TB = min(block_batch, _round_up(_cdiv(B, 2), SUBLANE))
    num_tiles = _cdiv(B, TB)          # last tile may be ragged; OOB rows never written

    # VMEM budget: double-buffered streamed x/out tiles + resident weights/biases
    # (pipeline still allocates 2 buffers for them) + in-kernel intermediates.
    vmem_bytes = (
        2 * TB * Din * x.dtype.itemsize                       # x tiles
        + 2 * TB * Dout * 4                                   # out tiles
        + 2 * (Din * H * 2 + H * 4 + H * Dout * 2 + Dout * 4) # weights/biases
        + TB * H * 4 + TB * Din * 2 + TB * Dout * 4           # h, x_bf16, logits
    )
    # Override v5e's 16 MiB scoped default; stay well under v7x's 64 MiB physical.
    vmem_limit = int(min(max(2 * vmem_bytes, 16 * 1024 * 1024), 48 * 1024 * 1024))

    return pl.pallas_call(
        simplenet_kernel,
        out_shape=out_shape,
        grid=(num_tiles,),
        in_specs=[
            pl.BlockSpec((TB, Din), lambda i: (i, 0)),    # x: streamed over batch
            pl.BlockSpec((Din, H), lambda i: (0, 0)),     # w1: resident
            pl.BlockSpec((1, H), lambda i: (0, 0)),       # b1: resident
            pl.BlockSpec((H, Dout), lambda i: (0, 0)),    # w2: resident
            pl.BlockSpec((1, Dout), lambda i: (0, 0)),    # b2: resident
        ],
        out_specs=pl.BlockSpec((TB, Dout), lambda i: (i, 0)),
        compiler_params=pltpu.CompilerParams(
            # batch tiles are independent -> megacore / dual-TC sharding on v7x
            dimension_semantics=("parallel",),
            vmem_limit_bytes=vmem_limit,
        ),
        cost_estimate=cost,
    )(x, w1, b1, w2, b2)


def reference_forward(x, w1, b1, w2, b2):
    h = jnp.maximum(x @ w1 + b1, 0.0)
    return h @ w2 + b2


if __name__ == "__main__":
    # Shapes implied by the module: Linear(input_dim, hidden_dim), Linear(hidden_dim, output_dim)
    batch, input_dim, hidden_dim, output_dim = 8, 16, 32, 8

    key = jax.random.PRNGKey(0)
    kx, k1, k2, k3, k4 = jax.random.split(key, 5)

    x = jax.random.normal(kx, (batch, input_dim), dtype=jnp.float32)

    # Deterministic parameter init (uniform, a la PyTorch Linear's default scale).
    bound1 = 1.0 / (input_dim ** 0.5)
    bound2 = 1.0 / (hidden_dim ** 0.5)
    w1 = jax.random.uniform(k1, (input_dim, hidden_dim), minval=-bound1, maxval=bound1,
                            dtype=jnp.float32)
    b1 = jax.random.uniform(k2, (hidden_dim,), minval=-bound1, maxval=bound1,
                            dtype=jnp.float32)
    w2 = jax.random.uniform(k3, (hidden_dim, output_dim), minval=-bound2, maxval=bound2,
                            dtype=jnp.float32)
    b2 = jax.random.uniform(k4, (output_dim,), minval=-bound2, maxval=bound2,
                            dtype=jnp.float32)

    # One-time parameter prep (bf16 weights, f32 [1,N] biases) -- reused by every call.
    params = prepare_params(w1, b1, w2, b2)

    # bf16 MXU inputs with f32 accumulation -> loosen tolerances vs. pure-f32 reference.
    TOL = dict(atol=5e-2, rtol=5e-2)

    # Small-batch path (no grid, single VMEM blocks).
    out = simplenet_forward(x, params)
    jax.block_until_ready(out)
    ref = reference_forward(x, w1, b1, w2, b2)
    assert out.shape == (batch, output_dim)
    assert jnp.allclose(out, ref, **TOL), "mismatch vs. JAX reference (small batch)"

    # Large-batch path: batch-only grid, ragged last tile, >=2 tiles for dual-TC v7x.
    big_batch = 600  # not a multiple of the tile -> exercises the masked last tile
    xb = jax.random.normal(jax.random.PRNGKey(1), (big_batch, input_dim), dtype=jnp.float32)
    out_b = simplenet_forward(xb, params, block_batch=512)
    jax.block_until_ready(out_b)
    ref_b = reference_forward(xb, w1, b1, w2, b2)
    assert out_b.shape == (big_batch, output_dim)
    assert jnp.allclose(out_b, ref_b, **TOL), "mismatch vs. JAX reference (tiled batch)"

    print("KERNEL_OK")
</pallas_src>

<mosaic_0001>
module attributes {stable_mosaic.version = 11 : i64} {
  func.func @simplenet_kernel(%arg0: memref<8x16xf32, #tpu.memory_space<vmem>>, %arg1: memref<16x32xbf16, #tpu.memory_space<vmem>>, %arg2: memref<1x32xf32, #tpu.memory_space<vmem>>, %arg3: memref<32x8xbf16, #tpu.memory_space<vmem>>, %arg4: memref<1x8xf32, #tpu.memory_space<vmem>>, %arg5: memref<8x8xf32, #tpu.memory_space<vmem>>) attributes {dimension_semantics = [], scalar_prefetch = 0 : i64, scratch_operands = 0 : i64, tpu.core_type = #tpu.core_type<tc>} {
    %c0 = arith.constant 0 : index
    %c0_0 = arith.constant 0 : index
    %0 = vector.load %arg0[%c0, %c0_0] : memref<8x16xf32, #tpu.memory_space<vmem>>, vector<8x16xf32>
    %1 = arith.truncf %0 : vector<8x16xf32> to vector<8x16xbf16>
    %c0_1 = arith.constant 0 : index
    %c0_2 = arith.constant 0 : index
    %2 = vector.load %arg1[%c0_1, %c0_2] : memref<16x32xbf16, #tpu.memory_space<vmem>>, vector<16x32xbf16>
    %cst = arith.constant dense<0.000000e+00> : vector<8x32xf32>
    %3 = tpu.matmul %1, %2, %cst {dimension_numbers = #tpu.dot_dimension_numbers<[1], [0], [0], [1], [0, 0, 1, 1], [], []>} : vector<8x16xbf16>, vector<16x32xbf16>, vector<8x32xf32> -> vector<8x32xf32>
    %c0_3 = arith.constant 0 : index
    %c0_4 = arith.constant 0 : index
    %4 = vector.load %arg2[%c0_3, %c0_4] : memref<1x32xf32, #tpu.memory_space<vmem>>, vector<1x32xf32>
    %5 = vector.broadcast %4 : vector<1x32xf32> to vector<8x32xf32>
    %6 = arith.addf %3, %5 : vector<8x32xf32>
    %cst_5 = arith.constant 0.000000e+00 : f32
    %7 = vector.broadcast %cst_5 : f32 to vector<8x32xf32>
    %8 = arith.maximumf %6, %7 : vector<8x32xf32>
    %9 = arith.truncf %8 : vector<8x32xf32> to vector<8x32xbf16>
    %c0_6 = arith.constant 0 : index
    %c0_7 = arith.constant 0 : index
    %10 = vector.load %arg3[%c0_6, %c0_7] : memref<32x8xbf16, #tpu.memory_space<vmem>>, vector<32x8xbf16>
    %cst_8 = arith.constant dense<0.000000e+00> : vector<8x8xf32>
    %11 = tpu.matmul %9, %10, %cst_8 {dimension_numbers = #tpu.dot_dimension_numbers<[1], [0], [0], [1], [0, 0, 1, 1], [], []>} : vector<8x32xbf16>, vector<32x8xbf16>, vector<8x8xf32> -> vector<8x8xf32>
    %c0_9 = arith.constant 0 : index
    %c0_10 = arith.constant 0 : index
    %12 = vector.load %arg4[%c0_9, %c0_10] : memref<1x8xf32, #tpu.memory_space<vmem>>, vector<1x8xf32>
    %13 = vector.broadcast %12 : vector<1x8xf32> to vector<8x8xf32>
    %14 = arith.addf %11, %13 : vector<8x8xf32>
    %c0_11 = arith.constant 0 : index
    %c0_12 = arith.constant 0 : index
    %15 = vector.load %arg5[%c0_11, %c0_12] : memref<8x8xf32, #tpu.memory_space<vmem>>, vector<8x8xf32>
    tpu.vector_store %arg5[%c0_11, %c0_12], %14 {strides = array<i32>} : memref<8x8xf32, #tpu.memory_space<vmem>>, vector<8x8xf32>,
    return
  }
}

</mosaic_0001>

<llo_original>
// kernel: tpu_custom_call.1
$region0: #{tpu_custom_call.1}
  #allocation0 [shape = 'u32[]', space=smem, size = 0x4, offset = 0x4, fixed_abs, tag = 'smem constant byte address 0x4 - core index']
  #allocation1 [shape = 'u32[144,128]{1,0:T(1,128)}', space=vmem, size = 0x12000, scoped, tag = 'internal scratch']
  %s0 = inlined_call_operand.vmem [shape: f32[8,16], index: 0, kind: input, shape index: {}]
  %s1 = inlined_call_operand.vmem [shape: bf16[16,32], index: 1, kind: input, shape index: {}]
  %s2 = inlined_call_operand.vmem [shape: f32[1,32], index: 2, kind: input, shape index: {}]
  %s3 = inlined_call_operand.vmem [shape: bf16[32,8], index: 3, kind: input, shape index: {}]
  %s4 = inlined_call_operand.vmem [shape: f32[1,8], index: 4, kind: input, shape index: {}]
  %s5 = inlined_call_operand.hbm [shape: f32[8,8], index: 5, kind: output, shape index: {}]
  %s6 = sld [smem:[#allocation0]]
  $region30: #{tpu_custom_call.1} parent=0
    _
  %s8 = ssub.s32 1, %s6
  %s9 = scalar_select 0, %s8, %s6
  $region1: #{tpu_custom_call.1} parent=0
    #allocation2 [shape = 'u8[4096]{0}', space=vmem, size = 0x1000, scoped, tag = 'output window, operand 0, single buffered']
    #allocation3 [shape = 's32[1]{0}', space=sflag, size = 0x4, scoped, tag = 'scoped memory for tpu_custom_call.1']
    %10 = vsyncpa [#allocation3], 0
    // Predicated region
    $region2: #{tpu_custom_call.1} parent=1 // pred_check
      _
    $region3: #{tpu_custom_call.1} parent=1 // pred_check_branch
      %12 = sbr.rel (0) target = $region5
    $region4: #{tpu_custom_call.1} parent=1 // pred_region
      _
    $region5: #{tpu_custom_call.1} parent=1 // pred_fallthru
      _
    // Predicated region
    $region6: #{tpu_custom_call.1} parent=1 // pred_check
      _
    $region7: #{tpu_custom_call.1} parent=1 // pred_check_branch
      %14 = sbr.rel (0) target = $region9
    $region8: #{tpu_custom_call.1} parent=1 // pred_region
      _
    $region9: #{tpu_custom_call.1} parent=1 // pred_fallthru
      _
    // Predicated region
    $region10: #{tpu_custom_call.1} parent=1 // pred_check
      _
    $region11: #{tpu_custom_call.1} parent=1 // pred_check_branch
      %16 = sbr.rel (0) target = $region13
    $region12: #{tpu_custom_call.1} parent=1 // pred_region
      _
    $region13: #{tpu_custom_call.1} parent=1 // pred_fallthru
      _
    // Predicated region
    $region14: #{tpu_custom_call.1} parent=1 // pred_check
      _
    $region15: #{tpu_custom_call.1} parent=1 // pred_check_branch
      %18 = sbr.rel (0) target = $region17
    $region16: #{tpu_custom_call.1} parent=1 // pred_region
      _
    $region17: #{tpu_custom_call.1} parent=1 // pred_fallthru
      _
    // Predicated region
    $region18: #{tpu_custom_call.1} parent=1 // pred_check
      _
    $region19: #{tpu_custom_call.1} parent=1 // pred_check_branch
      %20 = sbr.rel (0) target = $region21
    $region20: #{tpu_custom_call.1} parent=1 // pred_region
      _
    $region21: #{tpu_custom_call.1} parent=1 // pred_fallthru
      _
    %v22 = vld [vmem:[%s0] sm:$0xff]
    %v23 = vpack.c.bf16 %v22, %v22
    %v24 = vld [vmem:[%s1] sm:$0xf]
    %v25 = vld [vmem:[%s1 + $0x4] sm:$0xf]
    %v26 = vld [vmem:[%s2] sm:$0x1]
    %v28 = vlaneseq
    %v29 = vshrl.u32 %v28, 7
    %v30 = vsub.s32 0, %v29
    %v31 = vrot.slane %v26, %v30
    %v35 = vunpack.c.l.b16 %v24
    %v36 = vunpack.c.l.b16 %v25
    %v37 = vpack.c.b16 %v36, %v35
    %vm39 = vcmask 130048
    %v41 = vsel %vm39, %v23, 0
    %43 = vmatprep.subr.bf16.mxu0 0
    %44 = vmatpush1.bf16.msra.mxu0 %v37
    %45 = vmatprep.subr.bf16.mxu0 0
    %46 = vmatpush1.bf16.msra.mxu0 0
    %47 = vmatprep.subr.bf16.mxu0 0
    %48 = vmatpush1.bf16.msra.mxu0 0
    %49 = vmatprep.subr.bf16.mxu0 0
    %50 = vmatpush1.bf16.msra.mxu0 0
    %51 = vmatprep.subr.bf16.mxu0 0
    %52 = vmatpush1.bf16.msra.mxu0 0
    %53 = vmatprep.subr.bf16.mxu0 0
    %54 = vmatpush1.bf16.msra.mxu0 0
    %55 = vmatprep.subr.bf16.mxu0 0
    %56 = vmatpush1.bf16.msra.mxu0 0
    %57 = vmatprep.subr.bf16.mxu0 0
    %58 = vmatpush1.bf16.msra.mxu0 0
    %59 = vmatprep.subr.bf16.mxu0 0
    %60 = vmatpush1.bf16.msra.mxu0 0
    %61 = vmatprep.subr.bf16.mxu0 0
    %62 = vmatpush1.bf16.msra.mxu0 0
    %63 = vmatprep.subr.bf16.mxu0 0
    %64 = vmatpush1.bf16.msra.mxu0 0
    %65 = vmatprep.subr.bf16.mxu0 0
    %66 = vmatpush1.bf16.msra.mxu0 0
    %67 = vmatprep.subr.bf16.mxu0 0
    %68 = vmatpush1.bf16.msra.mxu0 0
    %69 = vmatprep.subr.bf16.mxu0 0
    %70 = vmatpush1.bf16.msra.mxu0 0
    %71 = vmatprep.subr.bf16.mxu0 0
    %72 = vmatpush1.bf16.msra.mxu0 0
    %73 = vmatprep.subr.bf16.mxu0 0
    %74 = vmatpush1.bf16.msra.mxu0 0
    %75 = vmatprep.mubr.bf16.mxu0 0
    %76 = vmatmul.mubr.bf16.gmra.mrb[0].mxu0 %v41
    %v77 = vpop.f32.mrb[0].mxu0
    %v78 = vadd.f32 %v31, %v77
    %v79 = vpop.f32.mrb[0].mxu0
    %v80 = vpop.f32.mrb[0].mxu0
    %v81 = vpop.f32.mrb[0].mxu0
    %82 = vdwg.mxu0
    %v83 = vmax.f32 %v78, 0.0
    %v84 = vpack.c.bf16 %v83, %v83
    %v85 = vld [vmem:[%s3] sm:$0xf]
    %v86 = vld [vmem:[%s3 + $0x4] sm:$0xf]
    %v87 = vld [vmem:[%s3 + $0x8] sm:$0xf]
    %v88 = vld [vmem:[%s3 + $0xc] sm:$0xf]
    %v89 = vld [vmem:[%s4] sm:$0x1]
    %v91 = vlaneseq
    %v92 = vshrl.u32 %v91, 7
    %v93 = vsub.s32 0, %v92
    %v94 = vrot.slane %v89, %v93
    %v100 = vunpack.c.l.b16 %v85
    %v101 = vunpack.c.l.b16 %v86
    %v102 = vunpack.c.l.b16 %v87
    %v103 = vunpack.c.l.b16 %v88
    %v104 = vpack.c.b16 %v101, %v100
    %v105 = vpack.c.b16 %v103, %v102
    %vm108 = vcmask 261120
    %v110 = vsel %vm108, %v84, 0
    %112 = vmatprep.subr.bf16.mxu0 0
    %113 = vmatpush1.bf16.msra.mxu0 %v104
    %114 = vmatprep.subr.bf16.mxu0 0
    %115 = vmatpush1.bf16.msra.mxu0 %v105
    %116 = vmatprep.subr.bf16.mxu0 0
    %117 = vmatpush1.bf16.msra.mxu0 0
    %118 = vmatprep.subr.bf16.mxu0 0
    %119 = vmatpush1.bf16.msra.mxu0 0
    %120 = vmatprep.subr.bf16.mxu0 0
    %121 = vmatpush1.bf16.msra.mxu0 0
    %122 = vmatprep.subr.bf16.mxu0 0
    %123 = vmatpush1.bf16.msra.mxu0 0
    %124 = vmatprep.subr.bf16.mxu0 0
    %125 = vmatpush1.bf16.msra.mxu0 0
    %126 = vmatprep.subr.bf16.mxu0 0
    %127 = vmatpush1.bf16.msra.mxu0 0
    %128 = vmatprep.subr.bf16.mxu0 0
    %129 = vmatpush1.bf16.msra.mxu0 0
    %130 = vmatprep.subr.bf16.mxu0 0
    %131 = vmatpush1.bf16.msra.mxu0 0
    %132 = vmatprep.subr.bf16.mxu0 0
    %133 = vmatpush1.bf16.msra.mxu0 0
    %134 = vmatprep.subr.bf16.mxu0 0
    %135 = vmatpush1.bf16.msra.mxu0 0
    %136 = vmatprep.subr.bf16.mxu0 0
    %137 = vmatpush1.bf16.msra.mxu0 0
    %138 = vmatprep.subr.bf16.mxu0 0
    %139 = vmatpush1.bf16.msra.mxu0 0
    %140 = vmatprep.subr.bf16.mxu0 0
    %141 = vmatpush1.bf16.msra.mxu0 0
    %142 = vmatprep.subr.bf16.mxu0 0
    %143 = vmatpush1.bf16.msra.mxu0 0
    %144 = vmatprep.mubr.bf16.mxu0 0
    %145 = vmatmul.mubr.bf16.gmra.mrb[0].mxu0 %v110
    %v146 = vpop.f32.mrb[0].mxu0
    %v147 = vadd.f32 %v94, %v146
    %v148 = vpop.f32.mrb[0].mxu0
    %v149 = vpop.f32.mrb[0].mxu0
    %v150 = vpop.f32.mrb[0].mxu0
    %151 = vdwg.mxu0
    %vm152 = vcmask 64512
    %153 = vst.msk [vmem:[#allocation2] sm:$0xff] %vm152, %v147
    // Predicated region
    $region22: #{tpu_custom_call.1} parent=1 // pred_check
      _
    $region23: #{tpu_custom_call.1} parent=1 // pred_check_branch
      %155 = sbr.rel (0) target = $region25
    $region24: #{tpu_custom_call.1} parent=1 // pred_region
      %s157 = ssub.s32 128, 128
      %158 = vsyncadd [#allocation3], %s157
      %s160 = sshll.u32 [#allocation2], 4
      %s161 = int_to_ptr.vmem [resolvable:$true] %s160
      %163 = dma.vmem_to_hbm [thread:$0]  %s161, 128, %s5, [#allocation3]
    $region25: #{tpu_custom_call.1} parent=1 // pred_fallthru
      _
    // Predicated region
    $region26: #{tpu_custom_call.1} parent=1 // pred_check
      _
    $region27: #{tpu_custom_call.1} parent=1 // pred_check_branch
      %165 = sbr.rel (0) target = $region29
    $region28: #{tpu_custom_call.1} parent=1 // pred_region
      %166 = dma.done [#allocation3], 128
    $region29: #{tpu_custom_call.1} parent=1 // pred_fallthru
      _
    %167 = vsyncpa [#allocation3], 1

</llo_original>
